<compile_context>
chip_gen: v6e
topology: v6e:2x2x1
jax: 0.10.0
libtpu: 0.0.40
codegen_flags: <defaults>
</compile_context>

<pallas_src>
import jax
import jax.numpy as jnp
from jax.experimental import pallas as pl
from jax.experimental.pallas import tpu as pltpu


_LANES = 128


def _sublane_multiple(dtype) -> int:
    """Sublane packing for the second-to-last dim: 8 rows (4B), 16 (2B), 32 (1B)."""
    itemsize = jnp.dtype(dtype).itemsize
    return max(8, 32 // max(1, itemsize))


def _chip_config():
    """Returns (block_bytes, vmem_limit_bytes, row_axis_semantics) per TPU generation."""
    kind = ""
    vmem = None
    try:
        kind = jax.devices()[0].device_kind.lower()
    except Exception:
        pass
    try:
        vmem = pltpu.get_tpu_info().vmem_capacity_bytes
    except Exception:
        vmem = None

    if "v7" in kind:
        # v7x: 64 MiB VMEM per TensorCore (32 MiB scoped default).  Keep ~4 MiB tiles
        # (2 in + 2 out double-buffered = 16 MiB) and split the row grid over both TCs.
        return 4 * 1024 * 1024, 32 * 1024 * 1024, pltpu.CORE_PARALLEL

    big_vmem = (vmem is not None and vmem >= 100 * 1024 * 1024) or \
               ("v5" in kind) or ("v6" in kind)
    if big_vmem:
        # v5e / v5p / v6e: 128 MiB VMEM -> 8 MiB tiles (fewer grid steps, less per-step
        # overhead), 32 MiB double-buffered working set well inside a 64 MiB limit.
        return 8 * 1024 * 1024, 64 * 1024 * 1024, "parallel"

    # Unknown chip: conservative defaults that run everywhere.
    return 4 * 1024 * 1024, 32 * 1024 * 1024, "parallel"


def _make_kernel(mutate: bool):
    def kernel(x_ref, o_ref):
        x = x_ref[...]
        if mutate:
            x = -x                                   # fused negation (VPU)
        o_ref[...] = jnp.maximum(x, 0).astype(o_ref.dtype)   # activation = ReLU
    return kernel


def inverted_activation(x, *, mutate=True, donate_input=False, block_bytes=None):
    """y = ReLU(-x) if mutate else ReLU(x), as a tiled elementwise Pallas kernel."""
    # TODO(synk): the PyTorch module takes an arbitrary `activation`; ReLU is the
    # representative activation here (swap the jnp op in _make_kernel for others).
    orig_shape = x.shape
    dtype = x.dtype
    total = int(x.size)
    itemsize = jnp.dtype(dtype).itemsize

    if total == 0:
        return x

    tile_bytes, vmem_limit, row_sem = _chip_config()
    if block_bytes is not None:
        tile_bytes = int(block_bytes)

    sub = _sublane_multiple(dtype)
    row_bytes = _LANES * itemsize
    max_tile_rows = max(sub, (tile_bytes // row_bytes) // sub * sub)

    # Lane alignment only: pad the flat array by <=127 elements when total % 128 != 0.
    # Most NCHW shapes are already 128-aligned and take the zero-copy path.
    pad = (-total) % _LANES
    rows = (total + pad) // _LANES

    x_flat = jnp.reshape(x, (-1,))
    if pad:
        # TODO(synk): the <=127-element tail could be masked in-kernel (scalar-prefetch
        # `total` + pltpu.store mask) to avoid this extra HBM pass on odd-sized shapes.
        x_flat = jnp.pad(x_flat, (0, pad))
    x2d = jnp.reshape(x_flat, (rows, _LANES))

    if rows <= max_tile_rows:
        tile_rows = rows            # block == full array extent (always a legal block)
        grid_rows = 1
    else:
        tile_rows = max_tile_rows   # multiple of (sub, 128); the (8,128) rule is on the
        grid_rows = pl.cdiv(rows, tile_rows)   # BlockSpec -- uneven last block is masked

    call_kwargs = {}
    if donate_input and pad == 0:
        # Mirrors the in-place PyTorch semantics when the caller donates the buffer.
        # Only meaningful on the zero-copy path (otherwise it aliases a padded temp).
        call_kwargs["input_output_aliases"] = {0: 0}

    y2d = pl.pallas_call(
        _make_kernel(mutate),
        out_shape=jax.ShapeDtypeStruct((rows, _LANES), dtype),
        grid_spec=pltpu.PrefetchScalarGridSpec(
            num_scalar_prefetch=0,
            grid=(grid_rows,),
            in_specs=[pl.BlockSpec((tile_rows, _LANES), lambda i: (i, 0))],
            out_specs=pl.BlockSpec((tile_rows, _LANES), lambda i: (i, 0)),
        ),
        compiler_params=pltpu.CompilerParams(
            dimension_semantics=(row_sem,),
            vmem_limit_bytes=vmem_limit,
        ),
        cost_estimate=pl.CostEstimate(
            flops=total, transcendentals=0, bytes_accessed=2 * total * itemsize),
        **call_kwargs,
    )(x2d)

    y_flat = jnp.reshape(y2d, (-1,))
    if pad:
        y_flat = y_flat[:total]
    return jnp.reshape(y_flat, orig_shape)


if __name__ == "__main__":
    key = jax.random.PRNGKey(0)
    k0, k1, k2 = jax.random.split(key, 3)

    # NCHW input; total = 2048 is 128-aligned -> zero-copy fast path, single block.
    x = jax.random.normal(k0, (2, 4, 16, 16), dtype=jnp.float32)
    y = jax.block_until_ready(inverted_activation(x, mutate=True))
    y_ref = jnp.maximum(-x, 0.0)
    assert y.shape == x.shape and y.dtype == x.dtype
    assert jnp.allclose(y, y_ref, atol=1e-6), "mismatch vs reference (mutate=True)"

    # Odd-sized input: total = 1155 -> <=127-element lane-pad path.
    x_odd = jax.random.normal(k1, (3, 5, 7, 11), dtype=jnp.float32)
    y_odd = jax.block_until_ready(inverted_activation(x_odd, mutate=True))
    assert jnp.allclose(y_odd, jnp.maximum(-x_odd, 0.0), atol=1e-6), "mismatch (padded path)"

    # Lane-aligned, rows (=120) not a multiple of the forced 16-row tile -> uneven grid,
    # Pallas masks the partial last block (exercises the no-pad multi-step path).
    x_big = jax.random.normal(k2, (2, 3, 40, 64), dtype=jnp.float32)
    y_big = jax.block_until_ready(
        inverted_activation(x_big, mutate=True, block_bytes=8 * 1024))
    assert jnp.allclose(y_big, jnp.maximum(-x_big, 0.0), atol=1e-6), "mismatch (uneven grid)"

    # mutate=False path (plain activation).
    y_nomut = jax.block_until_ready(inverted_activation(x, mutate=False))
    assert jnp.allclose(y_nomut, jnp.maximum(x, 0.0), atol=1e-6), "mismatch (mutate=False)"

    print("KERNEL_OK")
</pallas_src>

<mosaic_0001>
module attributes {stable_mosaic.version = 11 : i64} {
  func.func @kernel(%arg0: i32, %arg1: memref<16x128xf32, #tpu.memory_space<vmem>>, %arg2: memref<16x128xf32, #tpu.memory_space<vmem>>) attributes {dimension_semantics = [#tpu.dimension_semantics<parallel>], iteration_bounds = array<i64: 1>, scalar_prefetch = 0 : i64, scratch_operands = 0 : i64, tpu.core_type = #tpu.core_type<tc>, window_params = [{transform_indices = @transform_0, window_bounds = array<i64: 16, 128>}, {transform_indices = @transform_1, window_bounds = array<i64: 16, 128>}]} {
    %c0 = arith.constant 0 : index
    %c0_0 = arith.constant 0 : index
    %0 = vector.load %arg1[%c0, %c0_0] : memref<16x128xf32, #tpu.memory_space<vmem>>, vector<16x128xf32>
    %cst = arith.constant 0.000000e+00 : f32
    %1 = vector.broadcast %cst : f32 to vector<16x128xf32>
    %2 = arith.subf %1, %0 : vector<16x128xf32>
    %cst_1 = arith.constant 0.000000e+00 : f32
    %3 = vector.broadcast %cst_1 : f32 to vector<16x128xf32>
    %4 = arith.maximumf %2, %3 : vector<16x128xf32>
    %c0_2 = arith.constant 0 : index
    %c0_3 = arith.constant 0 : index
    %5 = vector.load %arg2[%c0_2, %c0_3] : memref<16x128xf32, #tpu.memory_space<vmem>>, vector<16x128xf32>
    tpu.vector_store %arg2[%c0_2, %c0_3], %4 {strides = array<i32>} : memref<16x128xf32, #tpu.memory_space<vmem>>, vector<16x128xf32>,
    return
  }
  func.func @transform_0(%arg0: i32) -> (i32, i32) {
    %c0_i32 = arith.constant 0 : i32
    %c0_i32_0 = arith.constant 0 : i32
    return %arg0, %c0_i32 : i32, i32
  }
  func.func @transform_1(%arg0: i32) -> (i32, i32) {
    %c0_i32 = arith.constant 0 : i32
    %c0_i32_0 = arith.constant 0 : i32
    return %arg0, %c0_i32 : i32, i32
  }
}

</mosaic_0001>

<llo_original>
// kernel: tpu_custom_call.1
$region0: #{tpu_custom_call.1}
  #allocation0 [shape = 'u32[]', space=smem, size = 0x4, offset = 0x4, fixed_abs, tag = 'smem constant byte address 0x4 - core index']
  #allocation1 [shape = 'u32[144,128]{1,0:T(1,128)}', space=vmem, size = 0x12000, scoped, tag = 'internal scratch']
  %s0 = inlined_call_operand.hbm [shape: f32[16,128], index: 0, kind: input, shape index: {}]
  %s1 = inlined_call_operand.hbm [shape: f32[16,128], index: 1, kind: output, shape index: {}]
  %s2 = sld [smem:[#allocation0]]
  $region18: #{tpu_custom_call.1} parent=0
    _
  %s4 = ssub.s32 1, %s2
  %s5 = scalar_select 0, %s4, %s2
  $region1: #{tpu_custom_call.1} parent=0
    #allocation2 [shape = 'u8[8192]{0}', space=vmem, size = 0x2000, scoped, tag = 'input window, operand 0, single buffered']
    #allocation3 [shape = 's32[1]{0}', space=sflag, size = 0x4, scoped, tag = 'scoped memory for tpu_custom_call.1']
    #allocation4 [shape = 's32[1]{0}', space=sflag, size = 0x4, scoped, tag = 'scoped memory for tpu_custom_call.1']
    #allocation5 [shape = 'u8[8192]{0}', space=vmem, size = 0x2000, scoped, tag = 'output window, operand 0, single buffered']
    %6 = vsyncpa [#allocation3], 0
    %7 = vsyncpa [#allocation4], 0
    // Predicated region
    $region2: #{tpu_custom_call.1} parent=1 // pred_check
      _
    $region3: #{tpu_custom_call.1} parent=1 // pred_check_branch
      %9 = sbr.rel (0) target = $region5
    $region4: #{tpu_custom_call.1} parent=1 // pred_region
      %s11 = ssub.s32 256, 256
      %12 = vsyncadd [#allocation3], %s11
      %s13 = sshll.u32 [#allocation2], 4
      %s14 = int_to_ptr.vmem [resolvable:$true] %s13
      %19 = dma.hbm_to_vmem [thread:$0]  %s0, 256, %s14, [#allocation3], 128, 128, 8
    $region5: #{tpu_custom_call.1} parent=1 // pred_fallthru
      _
    // Predicated region
    $region6: #{tpu_custom_call.1} parent=1 // pred_check
      _
    $region7: #{tpu_custom_call.1} parent=1 // pred_check_branch
      %21 = sbr.rel (0) target = $region9
    $region8: #{tpu_custom_call.1} parent=1 // pred_region
      %22 = dma.done [#allocation3], 256
    $region9: #{tpu_custom_call.1} parent=1 // pred_fallthru
      _
    %v23 = vld [vmem:[#allocation2] sm:$0xff]
    %v24 = vld [vmem:[#allocation2 + $0x8] sm:$0xff]
    %v25 = vsub.f32 0.0, %v23
    %v26 = vsub.f32 0.0, %v24
    %v27 = vmax.f32 %v25, 0.0
    %v28 = vmax.f32 %v26, 0.0
    %29 = vst [vmem:[#allocation5] sm:$0xff] %v27
    %30 = vst [vmem:[#allocation5 + $0x8] sm:$0xff] %v28
    // Predicated region
    $region10: #{tpu_custom_call.1} parent=1 // pred_check
      _
    $region11: #{tpu_custom_call.1} parent=1 // pred_check_branch
      %32 = sbr.rel (0) target = $region13
    $region12: #{tpu_custom_call.1} parent=1 // pred_region
      %s34 = ssub.s32 256, 256
      %35 = vsyncadd [#allocation4], %s34
      %s36 = sshll.u32 [#allocation5], 4
      %s37 = int_to_ptr.vmem [resolvable:$true] %s36
      %42 = dma.vmem_to_hbm [thread:$0]  %s37, 256, %s1, [#allocation4], 128, 128, 8
    $region13: #{tpu_custom_call.1} parent=1 // pred_fallthru
      _
    // Predicated region
    $region14: #{tpu_custom_call.1} parent=1 // pred_check
      _
    $region15: #{tpu_custom_call.1} parent=1 // pred_check_branch
      %44 = sbr.rel (0) target = $region17
    $region16: #{tpu_custom_call.1} parent=1 // pred_region
      %45 = dma.done [#allocation4], 256
    $region17: #{tpu_custom_call.1} parent=1 // pred_fallthru
      _
    %46 = vsyncpa [#allocation3], 1
    %47 = vsyncpa [#allocation4], 1

</llo_original>
